<compile_context>
chip_gen: v6e
topology: v6e:2x2x1
jax: 0.10.0
libtpu: 0.0.40
codegen_flags: <defaults>
</compile_context>

<pallas_src>
import functools

import jax
import jax.numpy as jnp
from jax.experimental import pallas as pl
from jax.experimental.pallas import tpu as pltpu

_EPS = 1e-7


def _num_tensorcores():
    """Best-effort TensorCore-per-chip count (2 on v7x, 1 on v5e/v6e)."""
    try:
        info = pltpu.get_tpu_info()
        for attr in ("tensorcores_per_chip", "num_tensorcores", "num_cores",
                     "cores_per_chip", "core_count"):
            v = getattr(info, attr, None)
            if isinstance(v, int) and 0 < v <= 8:
                return v
    except Exception:
        pass
    return 1  # conservative: correctness identical, only loses megacore split


# -----------------------------------------------------------------------------
# Kernels
# -----------------------------------------------------------------------------
def _dice_family_kernel(logits_ref, tgt_ref, out_ref,
                        inter_acc, sump_acc, sumt_acc,
                        *, hw, tp, n_tiles, tiles_per_shard,
                        ignore_index, guard_dup, mask_tail):
    """Per-class softmax stats: intersection, sum(prob), sum(one-hot)."""
    s = pl.program_id(0)
    n = pl.program_id(1)
    t = pl.program_id(2)

    # NOTE: scratch is re-zeroed at (n==0, t==0) for every shard s.  This
    # relies on the leading "parallel" shard axis being split across cores
    # (never interleaved with (n, t) on one core), which is how Pallas
    # iterates grids today: s is outermost, per-core scratch is private.
    @pl.when((n == 0) & (t == 0))
    def _():
        inter_acc[...] = jnp.zeros_like(inter_acc)
        sump_acc[...] = jnp.zeros_like(sump_acc)
        sumt_acc[...] = jnp.zeros_like(sumt_acc)

    tile_idx = s * tiles_per_shard + t

    def compute():
        x = logits_ref[...].astype(jnp.float32)          # (C, TP)
        tgt = tgt_ref[...]                               # (1, TP) int32
        c = x.shape[0]

        valid = tgt != ignore_index                      # (1, TP)
        if mask_tail:
            # Ragged last tile: lane iota vs. scalar remaining-pixel count.
            lane = jax.lax.broadcasted_iota(jnp.int32, (1, tp), 1)
            in_bounds = lane < (hw - tile_idx * tp)
            valid = valid & in_bounds
            # Sanitize undefined tail lanes so they cannot produce NaN/Inf.
            x = jnp.where(in_bounds, x, 0.0)
        validf = valid.astype(jnp.float32)

        # Softmax over the class (sublane) axis: one reciprocal per pixel
        # instead of C divides per pixel (EUP is the binding unit here).
        m = jnp.max(x, axis=0, keepdims=True)            # (1, TP)
        e = jnp.exp(x - m)
        inv = pl.reciprocal(jnp.sum(e, axis=0, keepdims=True), approx=False)
        p = e * inv                                      # (C, TP)

        cls_ids = jax.lax.broadcasted_iota(jnp.int32, (c, tp), 0)
        onehot = (cls_ids == tgt).astype(jnp.float32) * validf
        p_m = p * validf

        inter_acc[...] += jnp.sum(p_m * onehot, axis=-1, keepdims=True)  # (C,1)
        sump_acc[...] += jnp.sum(p_m, axis=-1, keepdims=True)            # (C,1)
        sumt_acc[...] += jnp.sum(onehot, axis=-1, keepdims=True)         # (C,1)

    if guard_dup:
        # Over-allocated shard: skip duplicated (clamped) tail blocks outright.
        pl.when(tile_idx < n_tiles)(compute)
    else:
        compute()

    @pl.when((n == pl.num_programs(1) - 1) & (t == pl.num_programs(2) - 1))
    def _():
        out_ref[...] = jnp.concatenate(
            [inter_acc[...], sump_acc[...], sumt_acc[...]], axis=-1)  # (C,3)


def _focal_kernel(logits_ref, tgt_ref, out_ref,
                  focal_acc, cnt_acc,
                  *, hw, tp, n_tiles, tiles_per_shard,
                  ignore_index, guard_dup, mask_tail):
    """Per-class binary focal (gamma=2, alpha=None) sums + valid-pixel count."""
    s = pl.program_id(0)
    n = pl.program_id(1)
    t = pl.program_id(2)

    @pl.when((n == 0) & (t == 0))
    def _():
        focal_acc[...] = jnp.zeros_like(focal_acc)
        cnt_acc[...] = jnp.zeros_like(cnt_acc)

    tile_idx = s * tiles_per_shard + t

    def compute():
        x = logits_ref[...].astype(jnp.float32)          # (C, TP)
        tgt = tgt_ref[...]                               # (1, TP) int32
        c = x.shape[0]

        valid = tgt != ignore_index                      # (1, TP)
        if mask_tail:
            lane = jax.lax.broadcasted_iota(jnp.int32, (1, tp), 1)
            in_bounds = lane < (hw - tile_idx * tp)
            valid = valid & in_bounds
            x = jnp.where(in_bounds, x, 0.0)
        validf = valid.astype(jnp.float32)

        cls_ids = jax.lax.broadcasted_iota(jnp.int32, (c, tp), 0)
        y = (cls_ids == tgt).astype(jnp.float32)         # raw one-hot per class

        # Stable BCE-with-logits using a single exp:
        #   a = exp(-|x|); logpt = max(x,0) - x*y + log1p(a)
        # and pt = exp(-logpt) = sigmoid(z) with z = x if y==1 else -x,
        # computed algebraically from a (no second exp on the EUP).
        a = jnp.exp(-jnp.abs(x))
        logpt = jnp.maximum(x, 0.0) - x * y + jnp.log1p(a)
        z = jnp.where(y > 0.0, x, -x)
        pt = jnp.where(z >= 0.0, 1.0, a) * pl.reciprocal(1.0 + a, approx=False)
        focal = ((1.0 - pt) ** 2) * logpt * validf       # masked focal term

        focal_acc[...] += jnp.sum(focal, axis=-1, keepdims=True)    # (C,1)
        cnt_acc[...] += jnp.sum(validf, axis=-1, keepdims=True)     # (1,1)

    if guard_dup:
        pl.when(tile_idx < n_tiles)(compute)
    else:
        compute()

    @pl.when((n == pl.num_programs(1) - 1) & (t == pl.num_programs(2) - 1))
    def _():
        out_ref[...] = jnp.concatenate(
            [focal_acc[...],
             jnp.broadcast_to(cnt_acc[...], focal_acc.shape)], axis=-1)  # (C,2)


# -----------------------------------------------------------------------------
# pallas_call wrapper
# -----------------------------------------------------------------------------
def _compute_stats(logits3, target3, *, kernel_fn, nstats, scratch_shapes,
                   ignore_index, logits_block_budget_bytes=2 << 20):
    """logits3: (N, C, HW) logits (any float dtype); target3: (N, 1, HW) int32.

    Returns (C, nstats) float32 reduction statistics.
    """
    N, C, HW = logits3.shape

    # --- Pixel tile selection -------------------------------------------------
    # Biggest multiple of 128 whose f32 logits block fits the byte budget
    # (Mosaic elementwise temporaries cost ~8-10x the block, budgeted below),
    # or the full pixel dim if it already fits (single tile, no tail mask).
    tp_cap = max(128, (logits_block_budget_bytes // (4 * C)) // 128 * 128)
    tp = HW if HW <= tp_cap else tp_cap

    n_tiles = -(-HW // tp)
    nshard = max(1, min(_num_tensorcores(), n_tiles))   # 2 on v7x, 1 otherwise
    tiles_per_shard = -(-n_tiles // nshard)
    guard_dup = nshard * tiles_per_shard > n_tiles       # duplicated tail tiles?
    mask_tail = (HW % tp) != 0                           # ragged last tile?

    # --- VMEM budget ------------------------------------------------------------
    # double-buffered input blocks + elementwise temporaries (~10x logits block)
    # + tiny output/scratch.  32 MiB is within scoped/physical VMEM on
    # v5e (128 MiB), v6e (128 MiB) and v7x (64 MiB physical / 32 MiB scoped).
    blk_in = 4 * C * tp + 4 * tp
    est = 2 * blk_in + 10 * 4 * C * tp + (1 << 20)
    vmem_limit = int(min(max(est, 8 << 20), 32 << 20))

    def pix_block(s, n, t):
        # Clamp so the DMA never walks past the last real block; duplicated
        # clamped blocks are skipped in-kernel (guard_dup) and ragged lanes
        # are masked (mask_tail).
        return jnp.minimum(s * tiles_per_shard + t, n_tiles - 1)

    kernel = functools.partial(
        kernel_fn, hw=HW, tp=tp, n_tiles=n_tiles,
        tiles_per_shard=tiles_per_shard, ignore_index=ignore_index,
        guard_dup=guard_dup, mask_tail=mask_tail)

    partial_stats = pl.pallas_call(
        kernel,
        out_shape=jax.ShapeDtypeStruct((nshard, C, nstats), jnp.float32),
        grid_spec=pltpu.PrefetchScalarGridSpec(
            num_scalar_prefetch=0,
            grid=(nshard, N, tiles_per_shard),
            in_specs=[
                pl.BlockSpec((None, C, tp),
                             lambda s, n, t: (n, 0, pix_block(s, n, t))),
                pl.BlockSpec((None, 1, tp),
                             lambda s, n, t: (n, 0, pix_block(s, n, t))),
            ],
            out_specs=pl.BlockSpec((None, C, nstats),
                                   lambda s, n, t: (s, 0, 0)),
            scratch_shapes=scratch_shapes,
        ),
        compiler_params=pltpu.CompilerParams(
            dimension_semantics=("parallel", "arbitrary", "arbitrary"),
            vmem_limit_bytes=vmem_limit),
    )(logits3, target3)

    return jnp.sum(partial_stats, axis=0)            # (C, nstats)


# -----------------------------------------------------------------------------
# Loss glue (plain JAX on (C,)-sized statistics).
# -----------------------------------------------------------------------------
def _dice_from_stats(stats):
    inter, sum_p, sum_t = stats[:, 0], stats[:, 1], stats[:, 2]
    score = (2.0 * inter) / jnp.clip(sum_p + sum_t, _EPS, None)
    loss_c = (1.0 - score) * (sum_t > 0).astype(jnp.float32)
    return jnp.mean(loss_c)


def _tversky_from_stats(stats, alpha=0.5, beta=0.5, gamma=1.0):
    inter, sum_p, sum_t = stats[:, 0], stats[:, 1], stats[:, 2]
    fp = sum_p - inter
    fn = sum_t - inter
    score = inter / jnp.clip(inter + alpha * fp + beta * fn, _EPS, None)
    loss_c = (1.0 - score) * (sum_t > 0).astype(jnp.float32)
    # NOTE: gamma is applied to the class mean; identical to smp at gamma=1.0.
    return jnp.mean(loss_c) ** gamma


def _focal_from_stats(stats):
    focal_sum = stats[:, 0]
    n_valid = jnp.maximum(stats[0, 1], 1.0)
    # sum over classes of per-class means over valid pixels (smp multiclass).
    return jnp.sum(focal_sum / n_valid)


def torch_loss(preds, target, config):
    """Equivalent of TorchLoss(config)(preds, target).

    preds:  (N, C, H, W) float logits (NCHW, matching PyTorch; f32 or bf16)
    target: (N, H, W) int class labels (may contain ignore_index)
    """
    loss_type = config['loss_type']
    ignore_index = config['ignore_index']

    N, C, H, W = preds.shape
    logits3 = preds.reshape(N, C, H * W)                       # free NCHW view
    target3 = target.reshape(N, 1, H * W).astype(jnp.int32)    # free view

    if loss_type in ('Dice', 'Tversky', 'FocalTversky'):
        stats = _compute_stats(
            logits3, target3,
            kernel_fn=_dice_family_kernel, nstats=3,
            scratch_shapes=[pltpu.VMEM((C, 1), jnp.float32) for _ in range(3)],
            ignore_index=ignore_index)
        if loss_type == 'Dice':
            return _dice_from_stats(stats)
        elif loss_type == 'Tversky':
            return _tversky_from_stats(stats)
        else:
            # FocalTversky per the PyTorch module: (1 + tversky_loss) ** 0.75
            return jnp.power(1.0 + _tversky_from_stats(stats), 0.75)
    elif loss_type == 'Focal':
        stats = _compute_stats(
            logits3, target3,
            kernel_fn=_focal_kernel, nstats=2,
            scratch_shapes=[pltpu.VMEM((C, 1), jnp.float32),
                            pltpu.VMEM((1, 1), jnp.float32)],
            ignore_index=ignore_index)
        return _focal_from_stats(stats)
    else:
        raise ValueError('Unknown loss type')


# -----------------------------------------------------------------------------
# Pure-JAX reference (for a small correctness check in the demo).
# -----------------------------------------------------------------------------
def _reference_losses(preds, target, ignore_index):
    N, C, H, W = preds.shape
    x = preds.reshape(N, C, -1).astype(jnp.float32)
    t = target.reshape(N, 1, -1).astype(jnp.int32)
    validf = (t != ignore_index).astype(jnp.float32)
    p = jax.nn.softmax(x, axis=1) * validf
    cls = jnp.arange(C, dtype=jnp.int32).reshape(1, C, 1)
    oh_raw = (cls == t).astype(jnp.float32)
    oh = oh_raw * validf

    inter = jnp.sum(p * oh, axis=(0, 2))
    sum_p = jnp.sum(p, axis=(0, 2))
    sum_t = jnp.sum(oh, axis=(0, 2))

    dice_c = (1.0 - (2.0 * inter) / jnp.clip(sum_p + sum_t, _EPS, None))
    dice = jnp.mean(dice_c * (sum_t > 0))
    fp, fn = sum_p - inter, sum_t - inter
    tv_c = (1.0 - inter / jnp.clip(inter + 0.5 * fp + 0.5 * fn, _EPS, None))
    tversky = jnp.mean(tv_c * (sum_t > 0))

    logpt = jnp.maximum(x, 0.0) - x * oh_raw + jnp.log1p(jnp.exp(-jnp.abs(x)))
    pt = jnp.exp(-logpt)
    focal_sum = jnp.sum(((1.0 - pt) ** 2) * logpt * validf, axis=(0, 2))
    n_valid = jnp.maximum(jnp.sum(validf), 1.0)
    focal = jnp.sum(focal_sum / n_valid)

    return {'Dice': dice, 'Tversky': tversky, 'Focal': focal,
            'FocalTversky': jnp.power(1.0 + tversky, 0.75)}


# -----------------------------------------------------------------------------
if __name__ == "__main__":
    key = jax.random.PRNGKey(0)
    kp, kt, km = jax.random.split(key, 3)

    N, C, H, W = 2, 4, 16, 16
    ignore_index = -100

    preds = jax.random.normal(kp, (N, C, H, W), dtype=jnp.float32)
    target = jax.random.randint(kt, (N, H, W), 0, C, dtype=jnp.int32)
    # Sprinkle ignored pixels to exercise ignore_index masking.
    ignore_mask = jax.random.uniform(km, (N, H, W)) < 0.1
    target = jnp.where(ignore_mask, ignore_index, target)

    ref = _reference_losses(preds, target, ignore_index)

    ok = True
    for loss_type in ('Dice', 'Tversky', 'Focal', 'FocalTversky'):
        config = {'loss_type': loss_type, 'ignore_index': ignore_index}
        val = torch_loss(preds, target, config)
        jax.block_until_ready(val)
        if not bool(jnp.allclose(val, ref[loss_type], rtol=1e-4, atol=1e-5)):
            ok = False
            print(f"MISMATCH {loss_type}: pallas={float(val)} "
                  f"ref={float(ref[loss_type])}")

    if ok:
        print("KERNEL_OK")
</pallas_src>

<mosaic_0001>
module attributes {stable_mosaic.version = 11 : i64} {
  func.func @_dice_family_kernel(%arg0: i32, %arg1: i32, %arg2: i32, %arg3: memref<1x4x256xf32, #tpu.memory_space<vmem>>, %arg4: memref<1x1x256xi32, #tpu.memory_space<vmem>>, %arg5: memref<1x4x3xf32, #tpu.memory_space<vmem>>, %arg6: memref<4x1xf32, #tpu.memory_space<vmem>>, %arg7: memref<4x1xf32, #tpu.memory_space<vmem>>, %arg8: memref<4x1xf32, #tpu.memory_space<vmem>>) attributes {dimension_semantics = [#tpu.dimension_semantics<parallel>, #tpu.dimension_semantics<arbitrary>, #tpu.dimension_semantics<arbitrary>], iteration_bounds = array<i64: 1, 2, 1>, scalar_prefetch = 0 : i64, scratch_operands = 3 : i64, tpu.core_type = #tpu.core_type<tc>, window_params = [{transform_indices = @transform_0, window_bounds = array<i64: 1, 4, 256>}, {transform_indices = @transform_1, window_bounds = array<i64: 1, 1, 256>}, {transform_indices = @transform_2, window_bounds = array<i64: 1, 4, 3>}]} {
    %c0_i32 = arith.constant 0 : i32
    %0 = arith.cmpi eq, %arg1, %c0_i32 : i32
    %c0_i32_0 = arith.constant 0 : i32
    %1 = arith.cmpi eq, %arg2, %c0_i32_0 : i32
    %2 = arith.andi %0, %1 : i1
    %3 = arith.extui %2 : i1 to i32
    %c0_i32_1 = arith.constant 0 : i32
    %4 = arith.cmpi ne, %3, %c0_i32_1 : i32
    scf.if %4 {
      %cst_25 = arith.constant 0.000000e+00 : f32
      %53 = vector.broadcast %cst_25 : f32 to vector<4x1xf32>
      %c0_26 = arith.constant 0 : index
      %c0_27 = arith.constant 0 : index
      %54 = vector.load %arg6[%c0_26, %c0_27] : memref<4x1xf32, #tpu.memory_space<vmem>>, vector<4x1xf32>
      tpu.vector_store %arg6[%c0_26, %c0_27], %53 {strides = array<i32>} : memref<4x1xf32, #tpu.memory_space<vmem>>, vector<4x1xf32>,
      %cst_28 = arith.constant 0.000000e+00 : f32
      %55 = vector.broadcast %cst_28 : f32 to vector<4x1xf32>
      %c0_29 = arith.constant 0 : index
      %c0_30 = arith.constant 0 : index
      %56 = vector.load %arg7[%c0_29, %c0_30] : memref<4x1xf32, #tpu.memory_space<vmem>>, vector<4x1xf32>
      tpu.vector_store %arg7[%c0_29, %c0_30], %55 {strides = array<i32>} : memref<4x1xf32, #tpu.memory_space<vmem>>, vector<4x1xf32>,
      %cst_31 = arith.constant 0.000000e+00 : f32
      %57 = vector.broadcast %cst_31 : f32 to vector<4x1xf32>
      %c0_32 = arith.constant 0 : index
      %c0_33 = arith.constant 0 : index
      %58 = vector.load %arg8[%c0_32, %c0_33] : memref<4x1xf32, #tpu.memory_space<vmem>>, vector<4x1xf32>
      tpu.vector_store %arg8[%c0_32, %c0_33], %57 {strides = array<i32>} : memref<4x1xf32, #tpu.memory_space<vmem>>, vector<4x1xf32>,
    } else {
    }
    %c0 = arith.constant 0 : index
    %c0_2 = arith.constant 0 : index
    %c0_3 = arith.constant 0 : index
    %5 = vector.load %arg3[%c0, %c0_2, %c0_3] : memref<1x4x256xf32, #tpu.memory_space<vmem>>, vector<1x4x256xf32>
    %6 = vector.shape_cast %5 : vector<1x4x256xf32> to vector<4x256xf32>
    %c0_4 = arith.constant 0 : index
    %c0_5 = arith.constant 0 : index
    %c0_6 = arith.constant 0 : index
    %7 = vector.load %arg4[%c0_4, %c0_5, %c0_6] : memref<1x1x256xi32, #tpu.memory_space<vmem>>, vector<1x1x256xi32>
    %8 = vector.shape_cast %7 : vector<1x1x256xi32> to vector<1x256xi32>
    %c-100_i32 = arith.constant -100 : i32
    %9 = vector.broadcast %c-100_i32 : i32 to vector<1x256xi32>
    %10 = arith.cmpi ne, %8, %9 : vector<1x256xi32>
    %11 = arith.extui %10 : vector<1x256xi1> to vector<1x256xi32>
    %12 = arith.sitofp %11 : vector<1x256xi32> to vector<1x256xf32>
    %cst = arith.constant dense<0xFF800000> : vector<256xf32>
    %13 = vector.multi_reduction <maximumf>, %6, %cst [0] : vector<4x256xf32> to vector<256xf32>
    %14 = vector.shape_cast %13 : vector<256xf32> to vector<1x256xf32>
    %15 = vector.broadcast %14 : vector<1x256xf32> to vector<4x256xf32>
    %16 = arith.subf %6, %15 : vector<4x256xf32>
    %17 = math.exp %16 : vector<4x256xf32>
    %cst_7 = arith.constant dense<0.000000e+00> : vector<256xf32>
    %18 = vector.multi_reduction <add>, %17, %cst_7 [0] : vector<4x256xf32> to vector<256xf32>
    %19 = vector.shape_cast %18 : vector<256xf32> to vector<1x256xf32>
    %20 = tpu.reciprocal %19 : vector<1x256xf32> -> vector<1x256xf32>
    %21 = vector.broadcast %20 : vector<1x256xf32> to vector<4x256xf32>
    %22 = arith.mulf %17, %21 : vector<4x256xf32>
    %23 = tpu.iota {dimensions = array<i32: 0>} : vector<4x256xi32>
    %24 = vector.broadcast %8 : vector<1x256xi32> to vector<4x256xi32>
    %25 = arith.cmpi eq, %23, %24 : vector<4x256xi32>
    %26 = arith.extui %25 : vector<4x256xi1> to vector<4x256xi32>
    %27 = arith.sitofp %26 : vector<4x256xi32> to vector<4x256xf32>
    %28 = vector.broadcast %12 : vector<1x256xf32> to vector<4x256xf32>
    %29 = arith.mulf %27, %28 : vector<4x256xf32>
    %30 = vector.broadcast %12 : vector<1x256xf32> to vector<4x256xf32>
    %31 = arith.mulf %22, %30 : vector<4x256xf32>
    %c0_8 = arith.constant 0 : index
    %c0_9 = arith.constant 0 : index
    %32 = vector.load %arg6[%c0_8, %c0_9] : memref<4x1xf32, #tpu.memory_space<vmem>>, vector<4x1xf32>
    %33 = arith.mulf %31, %29 : vector<4x256xf32>
    %cst_10 = arith.constant dense<0.000000e+00> : vector<4xf32>
    %34 = vector.multi_reduction <add>, %33, %cst_10 [1] : vector<4x256xf32> to vector<4xf32>
    %35 = vector.shape_cast %34 : vector<4xf32> to vector<4x1xf32>
    %36 = arith.addf %32, %35 : vector<4x1xf32>
    %c0_11 = arith.constant 0 : index
    %c0_12 = arith.constant 0 : index
    %37 = vector.load %arg6[%c0_11, %c0_12] : memref<4x1xf32, #tpu.memory_space<vmem>>, vector<4x1xf32>
    tpu.vector_store %arg6[%c0_11, %c0_12], %36 {strides = array<i32>} : memref<4x1xf32, #tpu.memory_space<vmem>>, vector<4x1xf32>,
    %c0_13 = arith.constant 0 : index
    %c0_14 = arith.constant 0 : index
    %38 = vector.load %arg7[%c0_13, %c0_14] : memref<4x1xf32, #tpu.memory_space<vmem>>, vector<4x1xf32>
    %cst_15 = arith.constant dense<0.000000e+00> : vector<4xf32>
    %39 = vector.multi_reduction <add>, %31, %cst_15 [1] : vector<4x256xf32> to vector<4xf32>
    %40 = vector.shape_cast %39 : vector<4xf32> to vector<4x1xf32>
    %41 = arith.addf %38, %40 : vector<4x1xf32>
    %c0_16 = arith.constant 0 : index
    %c0_17 = arith.constant 0 : index
    %42 = vector.load %arg7[%c0_16, %c0_17] : memref<4x1xf32, #tpu.memory_space<vmem>>, vector<4x1xf32>
    tpu.vector_store %arg7[%c0_16, %c0_17], %41 {strides = array<i32>} : memref<4x1xf32, #tpu.memory_space<vmem>>, vector<4x1xf32>,
    %c0_18 = arith.constant 0 : index
    %c0_19 = arith.constant 0 : index
    %43 = vector.load %arg8[%c0_18, %c0_19] : memref<4x1xf32, #tpu.memory_space<vmem>>, vector<4x1xf32>
    %cst_20 = arith.constant dense<0.000000e+00> : vector<4xf32>
    %44 = vector.multi_reduction <add>, %29, %cst_20 [1] : vector<4x256xf32> to vector<4xf32>
    %45 = vector.shape_cast %44 : vector<4xf32> to vector<4x1xf32>
    %46 = arith.addf %43, %45 : vector<4x1xf32>
    %c0_21 = arith.constant 0 : index
    %c0_22 = arith.constant 0 : index
    %47 = vector.load %arg8[%c0_21, %c0_22] : memref<4x1xf32, #tpu.memory_space<vmem>>, vector<4x1xf32>
    tpu.vector_store %arg8[%c0_21, %c0_22], %46 {strides = array<i32>} : memref<4x1xf32, #tpu.memory_space<vmem>>, vector<4x1xf32>,
    %c1_i32 = arith.constant 1 : i32
    %48 = arith.cmpi eq, %arg1, %c1_i32 : i32
    %c0_i32_23 = arith.constant 0 : i32
    %49 = arith.cmpi eq, %arg2, %c0_i32_23 : i32
    %50 = arith.andi %48, %49 : i1
    %51 = arith.extui %50 : i1 to i32
    %c0_i32_24 = arith.constant 0 : i32
    %52 = arith.cmpi ne, %51, %c0_i32_24 : i32
    scf.if %52 {
      %c0_25 = arith.constant 0 : index
      %c0_26 = arith.constant 0 : index
      %53 = vector.load %arg6[%c0_25, %c0_26] : memref<4x1xf32, #tpu.memory_space<vmem>>, vector<4x1xf32>
      %c0_27 = arith.constant 0 : index
      %c0_28 = arith.constant 0 : index
      %54 = vector.load %arg7[%c0_27, %c0_28] : memref<4x1xf32, #tpu.memory_space<vmem>>, vector<4x1xf32>
      %c0_29 = arith.constant 0 : index
      %c0_30 = arith.constant 0 : index
      %55 = vector.load %arg8[%c0_29, %c0_30] : memref<4x1xf32, #tpu.memory_space<vmem>>, vector<4x1xf32>
      %56 = tpu.concatenate %53, %54, %55 in 1 : vector<4x1xf32>, vector<4x1xf32>, vector<4x1xf32> -> vector<4x3xf32>
      %c0_31 = arith.constant 0 : index
      %c0_32 = arith.constant 0 : index
      %c0_33 = arith.constant 0 : index
      %57 = vector.load %arg5[%c0_31, %c0_32, %c0_33] : memref<1x4x3xf32, #tpu.memory_space<vmem>>, vector<1x4x3xf32>
      %58 = vector.shape_cast %57 : vector<1x4x3xf32> to vector<4x3xf32>
      %59 = vector.shape_cast %56 : vector<4x3xf32> to vector<1x4x3xf32>
      tpu.vector_store %arg5[%c0_31, %c0_32, %c0_33], %59 {strides = array<i32>} : memref<1x4x3xf32, #tpu.memory_space<vmem>>, vector<1x4x3xf32>,
    } else {
    }
    return
  }
  func.func @transform_0(%arg0: i32, %arg1: i32, %arg2: i32) -> (i32, i32, i32) {
    %c1_i32 = arith.constant 1 : i32
    %0 = arith.muli %arg0, %c1_i32 : i32
    %1 = arith.addi %0, %arg2 : i32
    %c0_i32 = arith.constant 0 : i32
    %2 = arith.minsi %1, %c0_i32 : i32
    %c0_i32_0 = arith.constant 0 : i32
    %c0_i32_1 = arith.constant 0 : i32
    return %arg1, %c0_i32_0, %2 : i32, i32, i32
  }
  func.func @transform_1(%arg0: i32, %arg1: i32, %arg2: i32) -> (i32, i32, i32) {
    %c1_i32 = arith.constant 1 : i32
    %0 = arith.muli %arg0, %c1_i32 : i32
    %1 = arith.addi %0, %arg2 : i32
    %c0_i32 = arith.constant 0 : i32
    %2 = arith.minsi %1, %c0_i32 : i32
    %c0_i32_0 = arith.constant 0 : i32
    %c0_i32_1 = arith.constant 0 : i32
    return %arg1, %c0_i32_0, %2 : i32, i32, i32
  }
  func.func @transform_2(%arg0: i32, %arg1: i32, %arg2: i32) -> (i32, i32, i32) {
    %c0_i32 = arith.constant 0 : i32
    %c0_i32_0 = arith.constant 0 : i32
    %c0_i32_1 = arith.constant 0 : i32
    return %arg0, %c0_i32, %c0_i32_0 : i32, i32, i32
  }
}

</mosaic_0001>

<llo_original>
// kernel: tpu_custom_call.1
$region0: #{tpu_custom_call.1}
  #allocation0 [shape = 'u32[]', space=smem, size = 0x4, offset = 0x4, fixed_abs, tag = 'smem constant byte address 0x4 - core index']
  #allocation1 [shape = 'u32[144,128]{1,0:T(1,128)}', space=vmem, size = 0x12000, scoped, tag = 'internal scratch']
  #allocation2 [shape = 'f32[4,1]{1,0:T(4,128)}', space=vmem, size = 0x800, scoped, tag = 'scratch operand']
  #allocation3 [shape = 'f32[4,1]{1,0:T(4,128)}', space=vmem, size = 0x800, scoped, tag = 'scratch operand']
  #allocation4 [shape = 'f32[4,1]{1,0:T(4,128)}', space=vmem, size = 0x800, scoped, tag = 'scratch operand']
  %s0 = inlined_call_operand.hbm [shape: f32[2,4,256], index: 0, kind: input, shape index: {}]
  %s1 = inlined_call_operand.hbm [shape: s32[2,1,256], index: 1, kind: input, shape index: {}]
  %s2 = inlined_call_operand.vmem [shape: f32[1,4,3], index: 2, kind: output, shape index: {}]
  %s3 = sld [smem:[#allocation0]]
  $region57: #{tpu_custom_call.1} parent=0
    _
  %s5 = ssub.s32 1, %s3
  %s6 = scalar_select 0, %s5, %s3
  $region1: #{tpu_custom_call.1} parent=0
    #allocation5 [shape = 'u8[8192]{0}', space=vmem, size = 0x2000, scoped, tag = 'input window, operand 0']
    #allocation6 [shape = 's32[2]{0}', space=sflag, size = 0x8, scoped, tag = 'scoped memory for tpu_custom_call.1']
    #allocation7 [shape = 'u8[2048]{0}', space=vmem, size = 0x800, scoped, tag = 'input window, operand 1']
    #allocation8 [shape = 's32[2]{0}', space=sflag, size = 0x8, scoped, tag = 'scoped memory for tpu_custom_call.1']
    %7 = vsyncpa [#allocation6], 0
    %s8 = scalar_lea.sflag [#allocation6], 1
    %9 = vsyncpa %s8, 0
    %10 = vsyncpa [#allocation8], 0
    %s11 = scalar_lea.sflag [#allocation8], 1
    %12 = vsyncpa %s11, 0
    loop: start=0, step=1, limit=4
    $region2: #{tpu_custom_call.1} parent=1 // loop_pre_header
      _
    $region3: #{tpu_custom_call.1} parent=1 // loop_header
      %s14 = sphi 0, %s18
      %p15 = scmp.ge.s32.totalorder %s14, 4
      %s21 = sphi 0, %s40
      %s22 = sphi 0, %s36
      %s23 = sphi 0, %s32
      %s24 = sphi 0, %s21
      %s25 = sphi 0, %s22
      %s26 = sphi 0, %s23
      %s27 = sphi 0, %s24
      %s28 = sphi 0, %s25
      %s29 = sphi 0, %s26
      %s51 = sphi 0, %s53
      %s54 = sphi 0, %s51
      %s55 = sphi 0, %s54
      %s71 = sphi 0, %s55
      %s85 = sphi 0, %s87
      %s88 = sphi 0, %s85
      %s89 = sphi 0, %s88
      %s105 = sphi 0, %s89
      %s111 = sphi 0, %s113
      %s114 = sphi 0, %s111
      %s115 = sphi 0, %s114
      %s131 = sphi 0, %s115
    $region4: #{tpu_custom_call.1} parent=1 // loop_header_branch
      %17 = sbr.rel (%p15) target = $region8
    $region5: #{tpu_custom_call.1} parent=1 // loop_body
      %s19 = ssub.s32 %s14, 1
      %s20 = ssub.s32 %s14, 2
      %s30 = sadd.s32 1, %s23
      %p31 = scmp.ge.s32.totalorder %s30, 1
      %s32 = scalar_select %p31, 0, %s30
      %s33 = sadd.s32 1, %s22
      %s34 = scalar_select %p31, %s33, %s22
      %p35 = scmp.ge.s32.totalorder %s34, 2
      %s36 = scalar_select %p35, 0, %s34
      %s37 = sadd.s32 1, %s21
      %s38 = scalar_select %p35, %s37, %s21
      %p39 = scmp.ge.s32.totalorder %s38, 1
      %s40 = scalar_select %p39, 0, %s38
      %s41 = sadd.s32 %s21, %s23
      %p42 = scmp.lt.s32.totalorder %s41, 0
      %s43 = scalar_select %p42, %s41, 0
      %s44 = sadd.s32 %s40, %s32
      %p45 = scmp.lt.s32.totalorder %s44, 0
      %s46 = scalar_select %p45, %s44, 0
      %s47 = ssub.s32 %s22, %s36
      %s48 = ssub.s32 %s43, %s46
      %s49 = sor.u32 %s47, %s48
      %p50 = scmp.eq.s32.totalorder %s49, 0
      %s52 = sadd.s32 %s51, 1
      %s53 = scalar_select %p50, %s51, %s52
      %p56 = pneg %p50
      %p57 = scmp.eq.s32.totalorder %s14, 1
      %p58 = por %p56, %p57
      %p59 = scmp.ne.s32.totalorder %s51, %s54
      %p60 = scmp.eq.s32.totalorder %s14, 0
      %p61 = por %p59, %p60
      %p62 = scmp.ne.s32.totalorder %s51, %s54
      %p63 = scmp.eq.s32.totalorder %s19, 1
      %p64 = por %p62, %p63
      %p65 = scmp.ne.s32.totalorder %s54, %s55
      %p66 = scmp.eq.s32.totalorder %s19, 0
      %p67 = por %p65, %p66
      %p68 = scmp.ne.s32.totalorder %s54, %s55
      %p69 = scmp.eq.s32.totalorder %s20, 1
      %p70 = por %p68, %p69
      %p72 = scmp.ne.s32.totalorder %s55, %s71
      %p73 = scmp.eq.s32.totalorder %s20, 0
      %p74 = por %p72, %p73
      %s75 = sadd.s32 %s21, %s23
      %p76 = scmp.lt.s32.totalorder %s75, 0
      %s77 = scalar_select %p76, %s75, 0
      %s78 = sadd.s32 %s40, %s32
      %p79 = scmp.lt.s32.totalorder %s78, 0
      %s80 = scalar_select %p79, %s78, 0
      %s81 = ssub.s32 %s22, %s36
      %s82 = ssub.s32 %s77, %s80
      %s83 = sor.u32 %s81, %s82
      %p84 = scmp.eq.s32.totalorder %s83, 0
      %s86 = sadd.s32 %s85, 1
      %s87 = scalar_select %p84, %s85, %s86
      %p90 = pneg %p84
      %p91 = scmp.eq.s32.totalorder %s14, 1
      %p92 = por %p90, %p91
      %p93 = scmp.ne.s32.totalorder %s85, %s88
      %p94 = scmp.eq.s32.totalorder %s14, 0
      %p95 = por %p93, %p94
      %p96 = scmp.ne.s32.totalorder %s85, %s88
      %p97 = scmp.eq.s32.totalorder %s19, 1
      %p98 = por %p96, %p97
      %p99 = scmp.ne.s32.totalorder %s88, %s89
      %p100 = scmp.eq.s32.totalorder %s19, 0
      %p101 = por %p99, %p100
      %p102 = scmp.ne.s32.totalorder %s88, %s89
      %p103 = scmp.eq.s32.totalorder %s20, 1
      %p104 = por %p102, %p103
      %p106 = scmp.ne.s32.totalorder %s89, %s105
      %p107 = scmp.eq.s32.totalorder %s20, 0
      %p108 = por %p106, %p107
      %s109 = ssub.s32 %s21, %s40
      %p110 = scmp.eq.s32.totalorder %s109, 0
      %s112 = sadd.s32 %s111, 1
      %s113 = scalar_select %p110, %s111, %s112
      %p116 = pneg %p110
      %p117 = scmp.eq.s32.totalorder %s14, 1
      %p118 = por %p116, %p117
      %p119 = scmp.ne.s32.totalorder %s111, %s114
      %p120 = scmp.eq.s32.totalorder %s14, 0
      %p121 = por %p119, %p120
      %p122 = scmp.ne.s32.totalorder %s111, %s114
      %p123 = scmp.eq.s32.totalorder %s19, 1
      %p124 = por %p122, %p123
      %p125 = scmp.ne.s32.totalorder %s114, %s115
      %p126 = scmp.eq.s32.totalorder %s19, 0
      %p127 = por %p125, %p126
      %p128 = scmp.ne.s32.totalorder %s114, %s115
      %p129 = scmp.eq.s32.totalorder %s20, 1
      %p130 = por %p128, %p129
      %p132 = scmp.ne.s32.totalorder %s115, %s131
      %p133 = scmp.eq.s32.totalorder %s20, 0
      %p134 = por %p132, %p133
      %p135 = scmp.le.s32.totalorder 1, %s14
      %p136 = scmp.lt.s32.totalorder %s14, 3
      %p137 = pnand %p135, %p136
      %p138 = pneg %p137
      // Predicated region
      $region9: #{tpu_custom_call.1} parent=5 // pred_check
        _
      $region10: #{tpu_custom_call.1} parent=5 // pred_check_branch
        %140 = sbr.rel (%p137) target = $region12
      $region11: #{tpu_custom_call.1} parent=5 // pred_region
        %s141 = ssub.s32 %s14, 1
      $region12: #{tpu_custom_call.1} parent=5 // pred_fallthru
        _
      %p142 = scmp.lt.s32.totalorder %s14, 2
      // Predicated region
      $region13: #{tpu_custom_call.1} parent=5 // pred_check
        %p143 = pneg %p142
      $region14: #{tpu_custom_call.1} parent=5 // pred_check_branch
        %145 = sbr.rel (%p143) target = $region16
      $region15: #{tpu_custom_call.1} parent=5 // pred_region
        // Predicated region
        $region17: #{tpu_custom_call.1} parent=15 // pred_check
          %p146 = pneg %p61
        $region18: #{tpu_custom_call.1} parent=15 // pred_check_branch
          %148 = sbr.rel (%p146) target = $region20
        $region19: #{tpu_custom_call.1} parent=15 // pred_region
          %s149 = sand.u32 %s51, 1
          %s150 = scalar_lea.sflag [#allocation6], %s149
          %s151 = sand.u32 %s51, 1
          %s152 = smul.addr %s151, 8
          %s153 = scalar_lea.vmem [#allocation5], %s152
          %s154 = sadd.s32 %s21, %s23
          %p155 = scmp.lt.s32.totalorder %s154, 0
          %s156 = scalar_select %p155, %s154, 0
          %s157 = smul.u32 2, %s156
          %s159 = ssub.s32 128, 128
          %160 = vsyncadd %s150, %s159
          %s161 = smul.addr %s22, 2
          %s162 = sadd.s32 %s157, %s161
          %s163 = smul.addr %s162, 64
          %s164 = scalar_lea.hbm %s0, %s163
          %s166 = sshll.u32 %s153, 4
          %s167 = int_to_ptr.vmem [resolvable:$true] %s166
          %169 = dma.hbm_to_vmem [thread:$0]  %s164, 128, %s167, %s150
        $region20: #{tpu_custom_call.1} parent=15 // pred_fallthru
          _
        // Predicated region
        $region21: #{tpu_custom_call.1} parent=15 // pred_check
          %p170 = pneg %p95
        $region22: #{tpu_custom_call.1} parent=15 // pred_check_branch
          %172 = sbr.rel (%p170) target = $region24
        $region23: #{tpu_custom_call.1} parent=15 // pred_region
          %s173 = sand.u32 %s85, 1
          %s174 = scalar_lea.sflag [#allocation8], %s173
          %s175 = sand.u32 %s85, 1
          %s176 = smul.addr %s175, 2
          %s177 = scalar_lea.vmem [#allocation7], %s176
          %s178 = sadd.s32 %s21, %s23
          %p179 = scmp.lt.s32.totalorder %s178, 0
          %s180 = scalar_select %p179, %s178, 0
          %s181 = smul.u32 2, %s180
          %s183 = ssub.s32 32, 32
          %184 = vsyncadd %s174, %s183
          %s185 = smul.addr %s22, 2
          %s186 = sadd.s32 %s181, %s185
          %s187 = smul.addr %s186, 16
          %s188 = scalar_lea.hbm %s1, %s187
          %s190 = sshll.u32 %s177, 4
          %s191 = int_to_ptr.vmem [resolvable:$true] %s190
          %193 = dma.hbm_to_vmem [thread:$0]  %s188, 32, %s191, %s174
        $region24: #{tpu_custom_call.1} parent=15 // pred_fallthru
          _
      $region16: #{tpu_custom_call.1} parent=5 // pred_fallthru
        _
      %p194 = scmp.le.s32.totalorder 1, %s14
      %p195 = scmp.lt.s32.totalorder %s14, 3
      %p196 = pnand %p194, %p195
      %p197 = pneg %p196
      // Predicated region
      $region25: #{tpu_custom_call.1} parent=5 // pred_check
        _
      $region26: #{tpu_custom_call.1} parent=5 // pred_check_branch
        %199 = sbr.rel (%p196) target = $region28
      $region27: #{tpu_custom_call.1} parent=5 // pred_region
        %s200 = ssub.s32 %s14, 1
        %s201 = sand.u32 %s54, 1
        %s202 = scalar_lea.sflag [#allocation6], %s201
        %s203 = sand.u32 %s54, 1
        %s204 = smul.addr %s203, 8
        %s205 = scalar_lea.vmem [#allocation5], %s204
        // Predicated region
        $region29: #{tpu_custom_call.1} parent=27 // pred_check
          %p206 = pneg %p67
        $region30: #{tpu_custom_call.1} parent=27 // pred_check_branch
          %208 = sbr.rel (%p206) target = $region32
        $region31: #{tpu_custom_call.1} parent=27 // pred_region
          %209 = dma.done %s202, 128
        $region32: #{tpu_custom_call.1} parent=27 // pred_fallthru
          _
        %s210 = sand.u32 %s88, 1
        %s211 = scalar_lea.sflag [#allocation8], %s210
        %s212 = sand.u32 %s88, 1
        %s213 = smul.addr %s212, 2
        %s214 = scalar_lea.vmem [#allocation7], %s213
        // Predicated region
        $region33: #{tpu_custom_call.1} parent=27 // pred_check
          %p215 = pneg %p101
        $region34: #{tpu_custom_call.1} parent=27 // pred_check_branch
          %217 = sbr.rel (%p215) target = $region36
        $region35: #{tpu_custom_call.1} parent=27 // pred_region
          %218 = dma.done %s211, 32
        $region36: #{tpu_custom_call.1} parent=27 // pred_fallthru
          _
        %s219 = sand.u32 %s54, 1
        %s220 = scalar_lea.sflag [#allocation6], %s219
        %s221 = sand.u32 %s54, 1
        %s222 = smul.addr %s221, 8
        %s223 = scalar_lea.vmem [#allocation5], %s222
        %p224 = pneg %p67
        %p225 = pneg %p64
        %s226 = sand.u32 %s88, 1
        %s227 = scalar_lea.sflag [#allocation8], %s226
        %s228 = sand.u32 %s88, 1
        %s229 = smul.addr %s228, 2
        %s230 = scalar_lea.vmem [#allocation7], %s229
        %p231 = pneg %p101
        %p232 = pneg %p98
        %p233 = pneg %p127
        %p234 = pneg %p124
        %p235 = scmp.lt.s32.totalorder %s24, 0
        %s236 = scalar_select %p235, %s24, 0
        %s237 = smul.addr %s236, 4
        %s238 = scalar_lea.vmem %s2, %s237
        %s239 = sadd.s32 %s24, %s26
        %p240 = scmp.lt.s32.totalorder %s239, 0
        %s241 = scalar_select %p240, %s239, 0
        %s242 = smul.u32 2, %s241
        %s243 = sadd.s32 %s24, %s26
        %p244 = scmp.lt.s32.totalorder %s243, 0
        %s245 = scalar_select %p244, %s243, 0
        %s246 = smul.u32 2, %s245
        %p247 = scmp.lt.s32.totalorder %s24, 0
        %s248 = scalar_select %p247, %s24, 0
        %s249 = smul.addr %s248, 4
        %s250 = scalar_lea.vmem %s2, %s249
        %p251 = scmp.eq.s32.totalorder %s25, 0
        %p252 = scmp.eq.s32.totalorder %s26, 0
        %p253 = pnand %p251, %p252
        %p254 = pneg %p253
        // Predicated region
        $region37: #{tpu_custom_call.1} parent=27 // pred_check
          _
        $region38: #{tpu_custom_call.1} parent=27 // pred_check_branch
          %256 = sbr.rel (%p253) target = $region40
        $region39: #{tpu_custom_call.1} parent=27 // pred_region
          %vm257 = vcmask 3072
          %258 = vst.msk [vmem:[#allocation2] sm:$0xf] %vm257, 0.0
          %259 = vst.msk [vmem:[#allocation3] sm:$0xf] %vm257, 0.0
          %260 = vst.msk [vmem:[#allocation4] sm:$0xf] %vm257, 0.0
        $region40: #{tpu_custom_call.1} parent=27 // pred_fallthru
          _
        %v261 = vld [vmem:[%s205] sm:$0xff]
        %v262 = vld [vmem:[%s214] sm:$0x3]
        %vm263 = vcmp.ne.s32.totalorder %v262, 4294967196
        %v264 = vsel %vm263, 1, 0
        %v265 = vcvt.s32.f32 %v264
        %v267 = vcombine.high %v261, %v261
        %vm269 = vcmask 1043456
        %v270 = vsel %vm269, %v261, -inf
        %v271 = vrot.slane %v270, 4
        %v272 = vmax.f32 %v270, %v271
        %v273 = vrot.slane %v272, 2
        %v274 = vmax.f32 %v272, %v273
        %v275 = vrot.slane %v274, 1
        %v276 = vmax.f32 %v274, %v275
        %v277 = vsel %vm269, %v267, -inf
        %v278 = vrot.slane %v277, 4
        %v279 = vmax.f32 %v277, %v278
        %v280 = vrot.slane %v279, 2
        %v281 = vmax.f32 %v279, %v280
        %v282 = vrot.slane %v281, 1
        %v283 = vmax.f32 %v281, %v282
        %v286 = vcombine.low %v276, %v283
        %v288 = vsub.f32 %v261, %v286
        %v289 = vmul.f32 %v288, 1.442695
        %v290 = vpow.pop %v289
        %v292 = vcombine.high %v290, %v290
        %v294 = vsel %vm269, %v290, 0.0
        %v295 = vrot.slane %v294, 4
        %v296 = vadd.f32 %v294, %v295
        %v297 = vrot.slane %v296, 2
        %v298 = vadd.f32 %v296, %v297
        %v299 = vrot.slane %v298, 1
        %v300 = vadd.f32 %v298, %v299
        %v301 = vsel %vm269, %v292, 0.0
        %v302 = vrot.slane %v301, 4
        %v303 = vadd.f32 %v301, %v302
        %v304 = vrot.slane %v303, 2
        %v305 = vadd.f32 %v303, %v304
        %v306 = vrot.slane %v305, 1
        %v307 = vadd.f32 %v305, %v306
        %v308 = vrcp.pop %v300
        %v309 = vrcp.pop %v307
        %v312 = vcombine.low %v308, %v309
        %v314 = vmul.f32 %v290, %v312
        %v315 = vlaneseq
        %v316 = vshrl.u32 %v315, 7
        %v317 = vlaneseq
        %v318 = vshrl.u32 %v317, 7
        %v319 = vsub.s32 0, %v318
        %v320 = vrot.slane %v262, %v319
        %v321 = vlaneseq
        %v322 = vshrl.u32 %v321, 7
        %v323 = vsub.s32 1, %v322
        %v324 = vrot.slane %v262, %v323
        %vm325 = vcmp.eq.s32.totalorder %v316, %v320
        %vm326 = vcmp.eq.s32.totalorder %v316, %v324
        %v327 = vsel %vm325, 1, 0
        %v328 = vsel %vm326, 1, 0
        %v329 = vcvt.s32.f32 %v327
        %v330 = vcvt.s32.f32 %v328
        %v332 = vlaneseq
        %v333 = vshrl.u32 %v332, 7
        %v334 = vsub.s32 0, %v333
        %v335 = vrot.slane %v265, %v334
        %v336 = vlaneseq
        %v337 = vshrl.u32 %v336, 7
        %v338 = vsub.s32 1, %v337
        %v339 = vrot.slane %v265, %v338
        %v342 = vmul.f32 %v329, %v335
        %v343 = vmul.f32 %v330, %v339
        %v344 = vcombine.low %v335, %v339
        %v346 = vmul.f32 %v314, %v344
        %v347 = vld [vmem:[#allocation2] sm:$0xf]
        %v350 = vcombine.low %v342, %v343
        %v352 = vmul.f32 %v346, %v350
        %v354 = vcombine.high %v352, %v352
        %v356 = vsel %vm269, %v352, 0.0
        %v357 = vsel %vm269, %v354, 0.0
        %v358 = vadd.f32 %v356, %v357
        %359 = vadd.xlane.f32.xlu0 %v358
        %v360 = vpop.xlane.xlu0 %359
        %v361 = vadd.f32 %v347, %v360
        %vm362 = vcmask 3072
        %363 = vst.msk [vmem:[#allocation2] sm:$0xf] %vm362, %v361
        %v364 = vld [vmem:[#allocation3] sm:$0xf]
        %v366 = vcombine.high %v346, %v346
        %v368 = vsel %vm269, %v346, 0.0
        %v369 = vsel %vm269, %v366, 0.0
        %v370 = vadd.f32 %v368, %v369
        %371 = vadd.xlane.f32.xlu0 %v370
        %v372 = vpop.xlane.xlu0 %371
        %v373 = vadd.f32 %v364, %v372
        %374 = vst.msk [vmem:[#allocation3] sm:$0xf] %vm362, %v373
        %v375 = vld [vmem:[#allocation4] sm:$0xf]
        %v376 = vsel %vm269, %v342, 0.0
        %v377 = vsel %vm269, %v343, 0.0
        %v378 = vadd.f32 %v376, %v377
        %379 = vadd.xlane.f32.xlu0 %v378
        %v380 = vpop.xlane.xlu0 %379
        %v381 = vadd.f32 %v375, %v380
        %382 = vst.msk [vmem:[#allocation4] sm:$0xf] %vm362, %v381
        %p383 = scmp.eq.s32.totalorder %s25, 1
        %p384 = pnand %p383, %p252
        %p385 = pneg %p384
        // Predicated region
        $region41: #{tpu_custom_call.1} parent=27 // pred_check
          _
        $region42: #{tpu_custom_call.1} parent=27 // pred_check_branch
          %387 = sbr.rel (%p384) target = $region44
        $region43: #{tpu_custom_call.1} parent=27 // pred_region
          %v388 = vld [vmem:[#allocation2] sm:$0xf]
          %v389 = vld [vmem:[#allocation3] sm:$0xf]
          %v390 = vld [vmem:[#allocation4] sm:$0xf]
          %392 = vrot.lane.b32.xlu0 %v389, 1
          %v393 = vpop.permute.xlu0 %392
          %396 = vrot.lane.b32.xlu0 %v390, 2
          %v397 = vpop.permute.xlu0 %396
          %vm399 = vcmask 7168
          %v400 = vsel %vm399, %v388, %v393
          %vm401 = vcmask 15360
          %v402 = vsel %vm401, %v400, %v397
          %vm403 = vcmask 19456
          %404 = vst.msk [vmem:[%s250] sm:$0xf] %vm403, %v402
        $region44: #{tpu_custom_call.1} parent=27 // pred_fallthru
          _
        %p405 = scmp.lt.s32.totalorder %s24, 0
        %s406 = scalar_select %p405, %s24, 0
        %s407 = smul.addr %s406, 4
        %s408 = scalar_lea.vmem %s2, %s407
        // Predicated region
        $region45: #{tpu_custom_call.1} parent=27 // pred_check
          %p409 = pneg %p124
        $region46: #{tpu_custom_call.1} parent=27 // pred_check_branch
          %411 = sbr.rel (%p409) target = $region48
        $region47: #{tpu_custom_call.1} parent=27 // pred_region
          _
        $region48: #{tpu_custom_call.1} parent=27 // pred_fallthru
          _
        // Predicated region
        $region49: #{tpu_custom_call.1} parent=27 // pred_check
          %p412 = pneg %p124
        $region50: #{tpu_custom_call.1} parent=27 // pred_check_branch
          %414 = sbr.rel (%p412) target = $region52
        $region51: #{tpu_custom_call.1} parent=27 // pred_region
          %p415 = scmp.lt.s32.totalorder %s24, 0
          %s416 = scalar_select %p415, %s24, 0
          %s417 = smul.addr %s416, 4
          %s418 = scalar_lea.vmem %s2, %s417
        $region52: #{tpu_custom_call.1} parent=27 // pred_fallthru
          _
      $region28: #{tpu_custom_call.1} parent=5 // pred_fallthru
        _
      %p419 = scmp.le.s32.totalorder 2, %s14
      // Predicated region
      $region53: #{tpu_custom_call.1} parent=5 // pred_check
        %p420 = pneg %p419
      $region54: #{tpu_custom_call.1} parent=5 // pred_check_branch
        %422 = sbr.rel (%p420) target = $region56
      $region55: #{tpu_custom_call.1} parent=5 // pred_region
        %s423 = ssub.s32 %s14, 2
      $region56: #{tpu_custom_call.1} parent=5 // pred_fallthru
        _
    $region6: #{tpu_custom_call.1} parent=1 // loop_footer
      %s18 = sadd.s32 1, %s14
    $region7: #{tpu_custom_call.1} parent=1 // loop_footer_branch
      %13 = sbr.rel target = $region3
    $region8: #{tpu_custom_call.1} parent=1 // loop_exit
      _
    %424 = vsyncpa [#allocation6], 1
    %s425 = scalar_lea.sflag [#allocation6], 1
    %426 = vsyncpa %s425, 1
    %427 = vsyncpa [#allocation8], 1
    %s428 = scalar_lea.sflag [#allocation8], 1
    %429 = vsyncpa %s428, 1

</llo_original>
